<compile_context>
chip_gen: v5e
topology: v5e:2x2
jax: 0.10.0
libtpu: 0.0.40
codegen_flags: <defaults>
</compile_context>

<pallas_src>
import math

import jax
import jax.numpy as jnp
from jax.experimental import pallas as pl
from jax.experimental.pallas import tpu as pltpu


def _round_up(x, m):
    return (x + m - 1) // m * m


def _itemsize(a):
    return jnp.dtype(a.dtype).itemsize


def _tpu_generation():
    """Best-effort TPU generation (5, 6, 7, ...) or 0 if unknown."""
    try:
        kind = jax.devices()[0].device_kind.lower()
    except Exception:
        return 0
    for g in (7, 6, 5, 4):
        if "v%d" % g in kind:
            return g
    return 0


def _vmem_capacity_bytes(gen):
    """Physical per-core VMEM, via pltpu.get_tpu_info when available."""
    try:
        cap = int(pltpu.get_tpu_info().vmem_capacity_bytes)
        if cap > 0:
            return cap
    except Exception:
        pass
    if gen >= 7:
        return 64 << 20       # v7x: 64 MiB per TensorCore
    if gen in (5, 6):
        return 128 << 20      # v5e / v6e
    return 64 << 20           # unknown: be conservative


def _pick_tm(M, tm_max, sublane, two_cores):
    """Row-tile size: multiple of sublane, <= tm_max, preferring a divisor of
    M (no padding); >= 2 tiles on v7x when M is large enough (megacore)."""
    tm_max = max((tm_max // sublane) * sublane, sublane)
    if M > tm_max:
        t = (tm_max // 128) * 128
        while t >= 128:
            if M % t == 0:
                return t          # divides M exactly -> no host-side padding
            t -= 128
        return tm_max             # fall back (M gets padded)
    if two_cores and M >= 256:
        # split across both TensorCores (v7x megacore on the "parallel" axis)
        return _round_up(pl.cdiv(M, 2), 128)
    return _round_up(M, sublane)


def _pick_tk(d_ff, d_model, tm, x_isz, w_isz, out_isz, budget, tk_max=None):
    """d_ff reduction-tile size derived from the VMEM budget.

    Returns (tk, d_ff_pad).  Prefers a 128-multiple divisor of d_ff; zero-pads
    d_ff otherwise (never falls back to tk == huge d_ff)."""
    fixed = (2 * tm * d_model * x_isz        # x tile   (double buffered)
             + 2 * tm * d_model * out_isz    # out tile (double buffered)
             + tm * d_model * 4              # f32 accumulator scratch
             + 2 * d_model * w_isz)          # b2
    per_tk = (2 * 2 * d_model * w_isz        # W1 + W2 slices, double buffered
              + 2 * w_isz                    # b1 slice
              + tm * 4)                      # f32 hidden intermediate
    cap = (budget - fixed) // per_tk
    cap = max((cap // 128) * 128, 128)
    if tk_max is not None:
        cap = min(cap, max((tk_max // 128) * 128, 128))
    if d_ff <= cap:
        return d_ff, d_ff                    # single reduction step
    t = cap
    while t >= 128:
        if d_ff % t == 0:
            return t, d_ff
        t -= 128
    return cap, _round_up(d_ff, cap)         # zero-pad d_ff


def _weight_block_spec(block_shape, index_map, extra_buffer):
    """BlockSpec for a streamed weight slice; optionally triple-buffered."""
    if extra_buffer:
        try:
            return pl.BlockSpec(block_shape, index_map,
                                pipeline_mode=pl.Buffered(3))
        except Exception:     # pipeline_mode unsupported -> default buffering
            pass
    return pl.BlockSpec(block_shape, index_map)


# --------------------------------------------------------------------------
# Kernels
# --------------------------------------------------------------------------

def _ffn_resident_kernel(x_ref, w1_ref, b1_ref, w2_ref, b2_ref, o_ref):
    """Full FFN on one row tile; weights are VMEM-resident (DMA'd once)."""
    h = jnp.dot(x_ref[...], w1_ref[...], preferred_element_type=jnp.float32)
    h = jnp.maximum(h + b1_ref[...].astype(jnp.float32), 0.0)   # bias + ReLU
    # dropout == identity (inference mode)
    out = jnp.dot(h.astype(w2_ref.dtype), w2_ref[...],
                  preferred_element_type=jnp.float32)
    o_ref[...] = (out + b2_ref[...].astype(jnp.float32)).astype(o_ref.dtype)


def _ffn_streamed_kernel(x_ref, w1_ref, b1_ref, w2_ref, b2_ref, o_ref,
                         acc_ref):
    """grid = (M tiles [parallel], d_ff tiles [reduction, innermost])."""
    k = pl.program_id(1)

    @pl.when(k == 0)
    def _():
        # Seed the accumulator with b2 so the epilogue is a pure cast+store.
        acc_ref[...] = jnp.broadcast_to(b2_ref[...].astype(jnp.float32),
                                        acc_ref.shape)

    h = jnp.dot(x_ref[...], w1_ref[...], preferred_element_type=jnp.float32)
    h = jnp.maximum(h + b1_ref[...].astype(jnp.float32), 0.0)   # bias + ReLU
    # dropout == identity (inference mode)
    acc_ref[...] += jnp.dot(h.astype(w2_ref.dtype), w2_ref[...],
                            preferred_element_type=jnp.float32)

    @pl.when(k == pl.num_programs(1) - 1)
    def _():
        o_ref[...] = acc_ref[...].astype(o_ref.dtype)


# --------------------------------------------------------------------------
# Wrapper
# --------------------------------------------------------------------------

def feed_forward_block(x, w1, b1, w2, b2, *, tm_max=None, tk_max=None,
                       force_streaming=False, interpret=False):
    """x: [batch, seq, d_model] -> [batch, seq, d_model].

    Weights are stored transposed relative to torch.nn.Linear:
      w1: [d_model, d_ff], b1: [d_ff], w2: [d_ff, d_model], b2: [d_model].
    """
    batch, seq, d_model = x.shape
    d_ff = w1.shape[1]
    M = batch * seq

    x_isz = _itemsize(x)
    out_isz = x_isz
    w_isz = max(_itemsize(w1), _itemsize(w2))
    sublane = 16 if x_isz == 2 else 8

    gen = _tpu_generation()
    vmem_cap = _vmem_capacity_bytes(gen)
    budget = int(0.85 * vmem_cap)   # headroom for compiler scratch/semaphores

    if tm_max is None:
        tm_max = {5: 256, 6: 512, 7: 512}.get(gen, 256)
    tm = _pick_tm(M, tm_max, sublane, two_cores=(gen >= 7))
    M_pad = _round_up(M, tm)

    x2d = x.reshape(M, d_model)
    if M_pad != M:
        # TODO(synk): a ragged/masked tail tile would avoid this extra HBM pass.
        x2d = jnp.pad(x2d, ((0, M_pad - M), (0, 0)))
    b1_2d = b1.reshape(1, d_ff)
    b2_2d = b2.reshape(1, d_model)

    n_m = M_pad // tm
    flops = 4 * M_pad * d_model * d_ff   # two matmuls, 2 flops / MAC

    # ---- Path A: weights fully resident in VMEM ---------------------------
    resident_bytes = (
        w1.size * _itemsize(w1) + w2.size * _itemsize(w2)
        + b1.size * _itemsize(b1) + b2.size * _itemsize(b2)
        + 2 * tm * d_model * x_isz        # x tile   (double buffered)
        + 2 * tm * d_model * out_isz      # out tile (double buffered)
        + tm * d_ff * 4                   # f32 hidden intermediate
        + tm * d_model * 4)               # f32 output accumulation temp
    if (not force_streaming) and resident_bytes <= budget:
        bytes_accessed = (x2d.size * x_isz + M_pad * d_model * out_isz
                          + w1.size * _itemsize(w1) + w2.size * _itemsize(w2)
                          + b1.size * _itemsize(b1) + b2.size * _itemsize(b2))
        out2d = pl.pallas_call(
            _ffn_resident_kernel,
            out_shape=jax.ShapeDtypeStruct((M_pad, d_model), x.dtype),
            grid_spec=pltpu.PrefetchScalarGridSpec(
                num_scalar_prefetch=0,
                grid=(n_m,),
                in_specs=[
                    pl.BlockSpec((tm, d_model), lambda i: (i, 0)),    # x tile
                    pl.BlockSpec((d_model, d_ff), lambda i: (0, 0)),  # W1 resident
                    pl.BlockSpec((1, d_ff), lambda i: (0, 0)),        # b1 resident
                    pl.BlockSpec((d_ff, d_model), lambda i: (0, 0)),  # W2 resident
                    pl.BlockSpec((1, d_model), lambda i: (0, 0)),     # b2 resident
                ],
                out_specs=pl.BlockSpec((tm, d_model), lambda i: (i, 0)),
            ),
            compiler_params=pltpu.CompilerParams(
                dimension_semantics=("parallel",),
                vmem_limit_bytes=budget),
            cost_estimate=pl.CostEstimate(
                flops=flops, transcendentals=0, bytes_accessed=bytes_accessed),
            interpret=interpret,
        )(x2d, w1, b1_2d, w2, b2_2d)
        return out2d[:M].reshape(batch, seq, d_model)

    # ---- Path B: stream W1/W2 slices over a d_ff reduction axis -----------
    tk, d_ff_pad = _pick_tk(d_ff, d_model, tm, x_isz, w_isz, out_isz,
                            budget, tk_max)
    if d_ff_pad != d_ff:
        pad = d_ff_pad - d_ff
        w1 = jnp.pad(w1, ((0, 0), (0, pad)))       # zero cols -> relu(0)=0
        b1_2d = jnp.pad(b1_2d, ((0, 0), (0, pad)))
        w2 = jnp.pad(w2, ((0, pad), (0, 0)))       # zero rows -> contribute 0
    n_k = d_ff_pad // tk

    def _streamed_vmem(nbuf_w):
        return (2 * tm * d_model * x_isz
                + 2 * tm * d_model * out_isz
                + tm * d_model * 4
                + tm * tk * 4
                + nbuf_w * d_model * tk * _itemsize(w1)
                + nbuf_w * tk * d_model * _itemsize(w2)
                + 2 * tk * _itemsize(b1)
                + 2 * d_model * _itemsize(b2))

    # v6e has VMEM headroom: a third weight buffer hides the per-k DMA burst.
    triple = (gen == 6) and (_streamed_vmem(3) <= budget)
    w1_spec = _weight_block_spec((d_model, tk), lambda i, k: (0, k), triple)
    w2_spec = _weight_block_spec((tk, d_model), lambda i, k: (k, 0), triple)

    bytes_accessed = (x2d.size * x_isz + M_pad * d_model * out_isz
                      + n_m * (w1.size * _itemsize(w1)
                               + w2.size * _itemsize(w2)
                               + b1_2d.size * _itemsize(b1))
                      + b2.size * _itemsize(b2))

    out2d = pl.pallas_call(
        _ffn_streamed_kernel,
        out_shape=jax.ShapeDtypeStruct((M_pad, d_model), x.dtype),
        grid_spec=pltpu.PrefetchScalarGridSpec(
            num_scalar_prefetch=0,
            grid=(n_m, n_k),
            in_specs=[
                pl.BlockSpec((tm, d_model), lambda i, k: (i, 0)),   # x tile
                w1_spec,                                            # W1 slice
                pl.BlockSpec((1, tk), lambda i, k: (0, k)),         # b1 slice
                w2_spec,                                            # W2 slice
                pl.BlockSpec((1, d_model), lambda i, k: (0, 0)),    # b2
            ],
            out_specs=pl.BlockSpec((tm, d_model), lambda i, k: (i, 0)),
            scratch_shapes=[pltpu.VMEM((tm, d_model), jnp.float32)],
        ),
        compiler_params=pltpu.CompilerParams(
            dimension_semantics=("parallel", "arbitrary"),
            vmem_limit_bytes=budget),
        cost_estimate=pl.CostEstimate(
            flops=flops, transcendentals=0, bytes_accessed=bytes_accessed),
        interpret=interpret,
    )(x2d, w1, b1_2d, w2, b2_2d)

    return out2d[:M].reshape(batch, seq, d_model)


def init_params(key, d_model, d_ff, dtype=jnp.float32):
    """Deterministic nn.Linear-style init: U(-1/sqrt(fan_in), 1/sqrt(fan_in))."""
    k1, k2, k3, k4 = jax.random.split(key, 4)
    bound1 = 1.0 / math.sqrt(d_model)
    bound2 = 1.0 / math.sqrt(d_ff)
    # stored pre-transposed: (in, out)
    w1 = jax.random.uniform(k1, (d_model, d_ff), dtype, -bound1, bound1)
    b1 = jax.random.uniform(k2, (d_ff,), dtype, -bound1, bound1)
    w2 = jax.random.uniform(k3, (d_ff, d_model), dtype, -bound2, bound2)
    b2 = jax.random.uniform(k4, (d_model,), dtype, -bound2, bound2)
    return w1, b1, w2, b2


if __name__ == "__main__":
    def reference(x, w1, b1, w2, b2):
        hp = jax.lax.Precision.HIGHEST
        h = jnp.maximum(jnp.dot(x, w1, precision=hp) + b1, 0.0)
        return jnp.dot(h, w2, precision=hp) + b2

    key = jax.random.PRNGKey(0)

    # Test 1: small shapes -> resident-weight path.
    batch, seq, d_model, d_ff = 2, 8, 32, 64
    kx, kp, key = jax.random.split(key, 3)
    x = jax.random.normal(kx, (batch, seq, d_model), jnp.float32)
    w1, b1, w2, b2 = init_params(kp, d_model, d_ff)
    out = jax.block_until_ready(feed_forward_block(x, w1, b1, w2, b2))
    ref = reference(x, w1, b1, w2, b2)
    assert out.shape == (batch, seq, d_model)
    assert jnp.allclose(out, ref, atol=2e-4, rtol=2e-4), \
        float(jnp.max(jnp.abs(out - ref)))

    # Test 2: force the streamed (d_ff-reduction) path with a ragged M
    # (tail padding) and multiple k steps.
    batch, seq, d_model, d_ff = 2, 13, 128, 384
    kx, kp = jax.random.split(key)
    x = jax.random.normal(kx, (batch, seq, d_model), jnp.float32)
    w1, b1, w2, b2 = init_params(kp, d_model, d_ff)
    out = jax.block_until_ready(
        feed_forward_block(x, w1, b1, w2, b2,
                           force_streaming=True, tk_max=128))
    ref = reference(x, w1, b1, w2, b2)
    assert out.shape == (batch, seq, d_model)
    assert jnp.allclose(out, ref, atol=2e-4, rtol=2e-4), \
        float(jnp.max(jnp.abs(out - ref)))

    print("KERNEL_OK")
</pallas_src>

<mosaic_0001>
module attributes {stable_mosaic.version = 11 : i64} {
  func.func @_ffn_resident_kernel(%arg0: i32, %arg1: memref<16x32xf32, #tpu.memory_space<vmem>>, %arg2: memref<32x64xf32, #tpu.memory_space<vmem>>, %arg3: memref<1x64xf32, #tpu.memory_space<vmem>>, %arg4: memref<64x32xf32, #tpu.memory_space<vmem>>, %arg5: memref<1x32xf32, #tpu.memory_space<vmem>>, %arg6: memref<16x32xf32, #tpu.memory_space<vmem>>) attributes {dimension_semantics = [#tpu.dimension_semantics<parallel>], iteration_bounds = array<i64: 1>, scalar_prefetch = 0 : i64, scratch_operands = 0 : i64, tpu.core_type = #tpu.core_type<tc>, window_params = [{transform_indices = @transform_0, window_bounds = array<i64: 16, 32>}, {pipeline_mode = #tpu.pipeline_mode<synchronous>, transform_indices = @transform_1, window_bounds = array<i64: 32, 64>}, {pipeline_mode = #tpu.pipeline_mode<synchronous>, transform_indices = @transform_2, window_bounds = array<i64: 1, 64>}, {pipeline_mode = #tpu.pipeline_mode<synchronous>, transform_indices = @transform_3, window_bounds = array<i64: 64, 32>}, {pipeline_mode = #tpu.pipeline_mode<synchronous>, transform_indices = @transform_4, window_bounds = array<i64: 1, 32>}, {transform_indices = @transform_5, window_bounds = array<i64: 16, 32>}]} {
    %c0 = arith.constant 0 : index
    %c0_0 = arith.constant 0 : index
    %0 = vector.load %arg1[%c0, %c0_0] : memref<16x32xf32, #tpu.memory_space<vmem>>, vector<16x32xf32>
    %c0_1 = arith.constant 0 : index
    %c0_2 = arith.constant 0 : index
    %1 = vector.load %arg2[%c0_1, %c0_2] : memref<32x64xf32, #tpu.memory_space<vmem>>, vector<32x64xf32>
    %cst = arith.constant dense<0.000000e+00> : vector<16x64xf32>
    %2 = tpu.matmul %0, %1, %cst {dimension_numbers = #tpu.dot_dimension_numbers<[1], [0], [0], [1], [0, 0, 1, 1], [], []>} : vector<16x32xf32>, vector<32x64xf32>, vector<16x64xf32> -> vector<16x64xf32>
    %c0_3 = arith.constant 0 : index
    %c0_4 = arith.constant 0 : index
    %3 = vector.load %arg3[%c0_3, %c0_4] : memref<1x64xf32, #tpu.memory_space<vmem>>, vector<1x64xf32>
    %4 = vector.broadcast %3 : vector<1x64xf32> to vector<16x64xf32>
    %5 = arith.addf %2, %4 : vector<16x64xf32>
    %cst_5 = arith.constant 0.000000e+00 : f32
    %6 = vector.broadcast %cst_5 : f32 to vector<16x64xf32>
    %7 = arith.maximumf %5, %6 : vector<16x64xf32>
    %c0_6 = arith.constant 0 : index
    %c0_7 = arith.constant 0 : index
    %8 = vector.load %arg4[%c0_6, %c0_7] : memref<64x32xf32, #tpu.memory_space<vmem>>, vector<64x32xf32>
    %cst_8 = arith.constant dense<0.000000e+00> : vector<16x32xf32>
    %9 = tpu.matmul %7, %8, %cst_8 {dimension_numbers = #tpu.dot_dimension_numbers<[1], [0], [0], [1], [0, 0, 1, 1], [], []>} : vector<16x64xf32>, vector<64x32xf32>, vector<16x32xf32> -> vector<16x32xf32>
    %c0_9 = arith.constant 0 : index
    %c0_10 = arith.constant 0 : index
    %10 = vector.load %arg5[%c0_9, %c0_10] : memref<1x32xf32, #tpu.memory_space<vmem>>, vector<1x32xf32>
    %11 = vector.broadcast %10 : vector<1x32xf32> to vector<16x32xf32>
    %12 = arith.addf %9, %11 : vector<16x32xf32>
    %c0_11 = arith.constant 0 : index
    %c0_12 = arith.constant 0 : index
    %13 = vector.load %arg6[%c0_11, %c0_12] : memref<16x32xf32, #tpu.memory_space<vmem>>, vector<16x32xf32>
    tpu.vector_store %arg6[%c0_11, %c0_12], %12 {strides = array<i32>} : memref<16x32xf32, #tpu.memory_space<vmem>>, vector<16x32xf32>,
    return
  }
  func.func @transform_0(%arg0: i32) -> (i32, i32) {
    %c0_i32 = arith.constant 0 : i32
    %c0_i32_0 = arith.constant 0 : i32
    return %arg0, %c0_i32 : i32, i32
  }
  func.func @transform_1(%arg0: i32) -> (i32, i32) {
    %c0_i32 = arith.constant 0 : i32
    %c0_i32_0 = arith.constant 0 : i32
    %c0_i32_1 = arith.constant 0 : i32
    return %c0_i32, %c0_i32_0 : i32, i32
  }
  func.func @transform_2(%arg0: i32) -> (i32, i32) {
    %c0_i32 = arith.constant 0 : i32
    %c0_i32_0 = arith.constant 0 : i32
    %c0_i32_1 = arith.constant 0 : i32
    return %c0_i32, %c0_i32_0 : i32, i32
  }
  func.func @transform_3(%arg0: i32) -> (i32, i32) {
    %c0_i32 = arith.constant 0 : i32
    %c0_i32_0 = arith.constant 0 : i32
    %c0_i32_1 = arith.constant 0 : i32
    return %c0_i32, %c0_i32_0 : i32, i32
  }
  func.func @transform_4(%arg0: i32) -> (i32, i32) {
    %c0_i32 = arith.constant 0 : i32
    %c0_i32_0 = arith.constant 0 : i32
    %c0_i32_1 = arith.constant 0 : i32
    return %c0_i32, %c0_i32_0 : i32, i32
  }
  func.func @transform_5(%arg0: i32) -> (i32, i32) {
    %c0_i32 = arith.constant 0 : i32
    %c0_i32_0 = arith.constant 0 : i32
    return %arg0, %c0_i32 : i32, i32
  }
}

</mosaic_0001>

<llo_original>
// kernel: tpu_custom_call.1
$region0: #{tpu_custom_call.1}
  #allocation0 [shape = 'u32[]', space=smem, size = 0x4, offset = 0x4, fixed_abs, tag = 'smem constant byte address 0x4 - core index']
  #allocation1 [shape = 'u32[72,128]{1,0:T(1,128)}', space=vmem, size = 0x9000, scoped, tag = 'internal scratch']
  %s0 = inlined_call_operand.vmem [shape: f32[16,32], index: 0, kind: input, shape index: {}]
  %s1 = inlined_call_operand.vmem [shape: f32[32,64], index: 1, kind: input, shape index: {}]
  %s2 = inlined_call_operand.vmem [shape: f32[1,64], index: 2, kind: input, shape index: {}]
  %s3 = inlined_call_operand.vmem [shape: f32[64,32], index: 3, kind: input, shape index: {}]
  %s4 = inlined_call_operand.vmem [shape: f32[1,32], index: 4, kind: input, shape index: {}]
  %s5 = inlined_call_operand.hbm [shape: f32[16,32], index: 5, kind: output, shape index: {}]
  %s6 = sld [smem:[#allocation0]]
  $region30: #{tpu_custom_call.1} parent=0
    _
  %s8 = ssub.s32 1, %s6
  %s9 = scalar_select 0, %s8, %s6
  $region1: #{tpu_custom_call.1} parent=0
    #allocation2 [shape = 'u8[8192]{0}', space=vmem, size = 0x2000, scoped, tag = 'output window, operand 0, single buffered']
    #allocation3 [shape = 's32[1]{0}', space=sflag, size = 0x4, scoped, tag = 'scoped memory for tpu_custom_call.1']
    %10 = vsyncpa [#allocation3], 0
    // Predicated region
    $region2: #{tpu_custom_call.1} parent=1 // pred_check
      _
    $region3: #{tpu_custom_call.1} parent=1 // pred_check_branch
      %12 = sbr.rel (0) target = $region5
    $region4: #{tpu_custom_call.1} parent=1 // pred_region
      _
    $region5: #{tpu_custom_call.1} parent=1 // pred_fallthru
      _
    // Predicated region
    $region6: #{tpu_custom_call.1} parent=1 // pred_check
      _
    $region7: #{tpu_custom_call.1} parent=1 // pred_check_branch
      %14 = sbr.rel (0) target = $region9
    $region8: #{tpu_custom_call.1} parent=1 // pred_region
      _
    $region9: #{tpu_custom_call.1} parent=1 // pred_fallthru
      _
    // Predicated region
    $region10: #{tpu_custom_call.1} parent=1 // pred_check
      _
    $region11: #{tpu_custom_call.1} parent=1 // pred_check_branch
      %16 = sbr.rel (0) target = $region13
    $region12: #{tpu_custom_call.1} parent=1 // pred_region
      _
    $region13: #{tpu_custom_call.1} parent=1 // pred_fallthru
      _
    // Predicated region
    $region14: #{tpu_custom_call.1} parent=1 // pred_check
      _
    $region15: #{tpu_custom_call.1} parent=1 // pred_check_branch
      %18 = sbr.rel (0) target = $region17
    $region16: #{tpu_custom_call.1} parent=1 // pred_region
      _
    $region17: #{tpu_custom_call.1} parent=1 // pred_fallthru
      _
    // Predicated region
    $region18: #{tpu_custom_call.1} parent=1 // pred_check
      _
    $region19: #{tpu_custom_call.1} parent=1 // pred_check_branch
      %20 = sbr.rel (0) target = $region21
    $region20: #{tpu_custom_call.1} parent=1 // pred_region
      _
    $region21: #{tpu_custom_call.1} parent=1 // pred_fallthru
      _
    %v21 = vld [vmem:[%s0] sm:$0xff]
    %v22 = vld [vmem:[%s0 + $0x8] sm:$0xff]
    %v23 = vld [vmem:[%s1] sm:$0xff]
    %v24 = vld [vmem:[%s1 + $0x8] sm:$0xff]
    %v25 = vld [vmem:[%s1 + $0x10] sm:$0xff]
    %v26 = vld [vmem:[%s1 + $0x18] sm:$0xff]
    %v27 = vld [vmem:[%s2] sm:$0x1]
    %v29 = vperm.slane %v27, 0
    %vm31 = vcmask 261120
    %v33 = vsel %vm31, %v21, 0
    %v36 = vsel %vm31, %v22, 0
    %38 = vmatpush.msra.mxu0 0.0
    %39 = vmatpush.msra.mxu0 0.0
    %40 = vmatpush.msra.mxu0 0.0
    %41 = vmatpush.msra.mxu0 0.0
    %42 = vmatpush.msra.mxu0 0.0
    %43 = vmatpush.msra.mxu0 0.0
    %44 = vmatpush.msra.mxu0 0.0
    %45 = vmatpush.msra.mxu0 0.0
    %46 = vmatpush.msra.mxu0 0.0
    %47 = vmatpush.msra.mxu0 0.0
    %48 = vmatpush.msra.mxu0 0.0
    %49 = vmatpush.msra.mxu0 0.0
    %50 = vmatpush.msra.mxu0 %v26
    %51 = vmatpush.msra.mxu0 %v25
    %52 = vmatpush.msra.mxu0 %v24
    %53 = vmatpush.msra.mxu0 %v23
    %54 = vmatmul.f32.gmra.mxu0 %v33
    %v55 = vpop.f32.mrf.mxu0
    %v56 = vadd.f32 %v29, %v55
    %57 = vmatmul.f32.gmra.mxu0 %v36
    %v58 = vpop.f32.mrf.mxu0
    %v59 = vadd.f32 %v29, %v58
    %60 = vdwg.mxu0
    %v61 = vmax.f32 %v56, 0.0
    %v62 = vmax.f32 %v59, 0.0
    %v63 = vld [vmem:[%s3] sm:$0xff]
    %v64 = vld [vmem:[%s3 + $0x8] sm:$0xff]
    %v65 = vld [vmem:[%s3 + $0x10] sm:$0xff]
    %v66 = vld [vmem:[%s3 + $0x18] sm:$0xff]
    %v67 = vld [vmem:[%s3 + $0x20] sm:$0xff]
    %v68 = vld [vmem:[%s3 + $0x28] sm:$0xff]
    %v69 = vld [vmem:[%s3 + $0x30] sm:$0xff]
    %v70 = vld [vmem:[%s3 + $0x38] sm:$0xff]
    %v71 = vld [vmem:[%s4] sm:$0x1]
    %v73 = vperm.slane %v71, 0
    %vm75 = vcmask 523264
    %v77 = vsel %vm75, %v61, 0
    %v80 = vsel %vm75, %v62, 0
    %82 = vmatpush.msra.mxu0 0.0
    %83 = vmatpush.msra.mxu0 0.0
    %84 = vmatpush.msra.mxu0 0.0
    %85 = vmatpush.msra.mxu0 0.0
    %86 = vmatpush.msra.mxu0 0.0
    %87 = vmatpush.msra.mxu0 0.0
    %88 = vmatpush.msra.mxu0 0.0
    %89 = vmatpush.msra.mxu0 0.0
    %90 = vmatpush.msra.mxu0 %v70
    %91 = vmatpush.msra.mxu0 %v69
    %92 = vmatpush.msra.mxu0 %v68
    %93 = vmatpush.msra.mxu0 %v67
    %94 = vmatpush.msra.mxu0 %v66
    %95 = vmatpush.msra.mxu0 %v65
    %96 = vmatpush.msra.mxu0 %v64
    %97 = vmatpush.msra.mxu0 %v63
    %98 = vmatmul.f32.gmra.mxu0 %v77
    %v99 = vpop.f32.mrf.mxu0
    %v100 = vadd.f32 %v73, %v99
    %101 = vmatmul.f32.gmra.mxu0 %v80
    %v102 = vpop.f32.mrf.mxu0
    %v103 = vadd.f32 %v73, %v102
    %104 = vdwg.mxu0
    %105 = vst.msk [vmem:[#allocation2] sm:$0xff] %vm31, %v100
    %106 = vst.msk [vmem:[#allocation2 + $0x8] sm:$0xff] %vm31, %v103
    // Predicated region
    $region22: #{tpu_custom_call.1} parent=1 // pred_check
      _
    $region23: #{tpu_custom_call.1} parent=1 // pred_check_branch
      %108 = sbr.rel (0) target = $region25
    $region24: #{tpu_custom_call.1} parent=1 // pred_region
      %110 = vsyncadd [#allocation3], 0
      %s111 = sshll.u32 [#allocation2], 4
      %s112 = int_to_ptr.vmem [resolvable:$true] %s111
      %s113 = sshll.u32 %s5, 4
      %s114 = int_to_ptr.hbm [resolvable:$true] %s113
      %119 = dma.vmem_to_hbm [thread:$0]  %s112, 256, %s114, [#allocation3], 128, 128, 8
    $region25: #{tpu_custom_call.1} parent=1 // pred_fallthru
      _
    // Predicated region
    $region26: #{tpu_custom_call.1} parent=1 // pred_check
      _
    $region27: #{tpu_custom_call.1} parent=1 // pred_check_branch
      %121 = sbr.rel (0) target = $region29
    $region28: #{tpu_custom_call.1} parent=1 // pred_region
      %123 = dma.done [#allocation3], 256
    $region29: #{tpu_custom_call.1} parent=1 // pred_fallthru
      _
    %124 = vsyncpa [#allocation3], 1

</llo_original>
